<compile_context>
chip_gen: v7x
topology: tpu7x:2x2x1
jax: 0.10.0
libtpu: 0.0.40
codegen_flags: <defaults>
</compile_context>

<pallas_src>
import jax
import jax.numpy as jnp
from jax.experimental import pallas as pl
from jax.experimental.pallas import tpu as pltpu


LANE = 128        # output feature dim padded to a multiple of this (lane-dense stores)
SUBLANE = 8       # batch tile must be a multiple of this
MAX_TB = 2048     # batch tile rows (multiple of 8)


def _round_up(n, m):
    return ((n + m - 1) // m) * m


def linear_kernel(x_ref, wt_ref, b_ref, o_ref):
    # MXU matmul with f32 accumulation + VPU bias add; lane-dense (128-wide) store.
    acc = jnp.dot(x_ref[...], wt_ref[...], preferred_element_type=jnp.float32)
    o_ref[...] = (acc + b_ref[...]).astype(o_ref.dtype)


def prepare_params(weight, bias, compute_dtype=jnp.float32):
    """One-time parameter prep; hoist out of the training/inference hot loop.

    weight: [O, D] (PyTorch nn.Linear convention), bias: [O]
    returns (wt_pad [D, O_pad] in compute_dtype, b_pad [1, O_pad] f32, O),
    with O_pad a multiple of 128 so every output store is an unmasked 128-lane vst.
    """
    O, D = weight.shape
    o_pad = _round_up(O, LANE)
    wt = weight.T.astype(compute_dtype)                                  # [D, O]
    wt_pad = jnp.zeros((D, o_pad), compute_dtype).at[:, :O].set(wt)
    b_pad = jnp.zeros((1, o_pad), jnp.float32).at[0, :O].set(bias.astype(jnp.float32))
    return wt_pad, b_pad, O


def _pick_batch_tile(B):
    tb = min(MAX_TB, _round_up(B, SUBLANE))
    # v7x has 2 TensorCores: when there is enough work, make sure the grid has at
    # least 2 steps so dimension_semantics=("parallel",) can shard across both.
    # (No-op for v5e/v6e's single TC.)
    if B > 2 * SUBLANE and tb >= B:
        tb = _round_up(pl.cdiv(B, 2), SUBLANE)
    return tb


def linear_forward_prepared(x, wt_pad, b_pad, out_dim, *,
                            pad_output=False, small_batch_xla=False):
    """Forward with pre-padded / pre-transposed parameters.

    x:      [B, D]
    wt_pad: [D, O_pad] (O_pad multiple of 128), b_pad: [1, O_pad] f32
    returns [B, out_dim] f32 logits, or the padded [B, O_pad] slab if
    pad_output=True (lets a downstream CE/argmax consume lanes [:out_dim] directly
    and skips the extra slice pass).
    """
    B, D = x.shape
    Dw, o_pad = wt_pad.shape
    assert Dw == D

    x = x.astype(wt_pad.dtype)

    # Single-step pallas_call is launch-latency bound; a caller may prefer plain XLA
    # for tiny batches (off by default so the kernel path is always exercised here).
    if small_batch_xla and B <= 64:
        out = jnp.dot(x, wt_pad, preferred_element_type=jnp.float32) + b_pad
        return out if pad_output else out[:, :out_dim]

    tb = _pick_batch_tile(B)
    grid = (pl.cdiv(B, tb),)   # ragged last block handled by Pallas (no pre-pad copy)

    out = pl.pallas_call(
        linear_kernel,
        out_shape=jax.ShapeDtypeStruct((B, o_pad), jnp.float32),
        grid_spec=pltpu.PrefetchScalarGridSpec(
            num_scalar_prefetch=0,
            grid=grid,
            in_specs=[
                pl.BlockSpec((tb, D), lambda i: (i, 0)),       # x: streams over batch
                pl.BlockSpec((D, o_pad), lambda i: (0, 0)),    # W^T: resident in VMEM
                pl.BlockSpec((1, o_pad), lambda i: (0, 0)),    # bias: resident in VMEM
            ],
            out_specs=pl.BlockSpec((tb, o_pad), lambda i: (i, 0)),
        ),
        compiler_params=pltpu.CompilerParams(
            dimension_semantics=("parallel",)),                # shards across v7x TCs
    )(x, wt_pad, b_pad)

    if pad_output:
        return out              # lanes [out_dim:] are zero-weight logits; mask downstream
    return out[:, :out_dim]


def logistic_regression_forward(x, weight, bias, compute_dtype=jnp.float32):
    """Convenience wrapper matching LogisticRegression.forward(y) = self.linear(y).

    NOTE: in a real training loop call prepare_params ONCE and use
    linear_forward_prepared directly; this wrapper re-pads the weight per call.
    """
    wt_pad, b_pad, out_dim = prepare_params(weight, bias, compute_dtype)
    return linear_forward_prepared(x, wt_pad, b_pad, out_dim)


if __name__ == "__main__":
    # Digits dataset: 8x8 images flattened -> input_dim=64, 10 classes.
    B, INPUT_DIM, OUTPUT_DIM = 8, 64, 10

    key = jax.random.PRNGKey(0)
    kx, kw, kb = jax.random.split(key, 3)

    x = jax.random.normal(kx, (B, INPUT_DIM), dtype=jnp.float32)
    bound = 1.0 / (INPUT_DIM ** 0.5)
    weight = jax.random.uniform(kw, (OUTPUT_DIM, INPUT_DIM),
                                minval=-bound, maxval=bound, dtype=jnp.float32)
    bias = jax.random.uniform(kb, (OUTPUT_DIM,),
                              minval=-bound, maxval=bound, dtype=jnp.float32)

    # Prepare params once, then run the f32 forward through the Pallas kernel.
    wt_pad, b_pad, out_dim = prepare_params(weight, bias)
    out = linear_forward_prepared(x, wt_pad, b_pad, out_dim)
    jax.block_until_ready(out)

    ref = x @ weight.T + bias
    assert out.shape == (B, OUTPUT_DIM)
    assert jnp.allclose(out, ref, atol=1e-5, rtol=1e-5)

    # Ragged batch (B not a multiple of the tile / sublane) through the cdiv grid.
    x2 = jax.random.normal(kx, (13, INPUT_DIM), dtype=jnp.float32)
    out2 = logistic_regression_forward(x2, weight, bias)
    jax.block_until_ready(out2)
    assert jnp.allclose(out2, x2 @ weight.T + bias, atol=1e-5, rtol=1e-5)

    # Larger batch so the grid has >= 2 parallel steps; also check the padded-output
    # path (lanes [OUTPUT_DIM:] are exactly zero-weight logits = bias pad = 0).
    x3 = jax.random.normal(kx, (100, INPUT_DIM), dtype=jnp.float32)
    out3_pad = linear_forward_prepared(x3, wt_pad, b_pad, out_dim, pad_output=True)
    jax.block_until_ready(out3_pad)
    assert out3_pad.shape == (100, 128)
    assert jnp.allclose(out3_pad[:, :OUTPUT_DIM], x3 @ weight.T + bias,
                        atol=1e-5, rtol=1e-5)
    assert jnp.allclose(out3_pad[:, OUTPUT_DIM:], 0.0)

    # Optional bf16 input/weight streams (f32 accumulate + f32 store); looser tol.
    wt_bf16, b_bf16, _ = prepare_params(weight, bias, compute_dtype=jnp.bfloat16)
    out_bf16 = linear_forward_prepared(x, wt_bf16, b_bf16, out_dim)
    jax.block_until_ready(out_bf16)
    assert jnp.allclose(out_bf16, ref, atol=3e-2, rtol=3e-2)

    print("KERNEL_OK")
</pallas_src>

<mosaic_0001>
module attributes {stable_mosaic.version = 11 : i64} {
  func.func @linear_kernel(%arg0: i32, %arg1: memref<8x64xf32, #tpu.memory_space<vmem>>, %arg2: memref<64x128xf32, #tpu.memory_space<vmem>>, %arg3: memref<1x128xf32, #tpu.memory_space<vmem>>, %arg4: memref<8x128xf32, #tpu.memory_space<vmem>>) attributes {dimension_semantics = [#tpu.dimension_semantics<parallel>], iteration_bounds = array<i64: 1>, scalar_prefetch = 0 : i64, scratch_operands = 0 : i64, tpu.core_type = #tpu.core_type<tc>, window_params = [{transform_indices = @transform_0, window_bounds = array<i64: 8, 64>}, {pipeline_mode = #tpu.pipeline_mode<synchronous>, transform_indices = @transform_1, window_bounds = array<i64: 64, 128>}, {pipeline_mode = #tpu.pipeline_mode<synchronous>, transform_indices = @transform_2, window_bounds = array<i64: 1, 128>}, {transform_indices = @transform_3, window_bounds = array<i64: 8, 128>}]} {
    %c0 = arith.constant 0 : index
    %c0_0 = arith.constant 0 : index
    %0 = vector.load %arg1[%c0, %c0_0] : memref<8x64xf32, #tpu.memory_space<vmem>>, vector<8x64xf32>
    %c0_1 = arith.constant 0 : index
    %c0_2 = arith.constant 0 : index
    %1 = vector.load %arg2[%c0_1, %c0_2] : memref<64x128xf32, #tpu.memory_space<vmem>>, vector<64x128xf32>
    %cst = arith.constant dense<0.000000e+00> : vector<8x128xf32>
    %2 = tpu.matmul %0, %1, %cst {dimension_numbers = #tpu.dot_dimension_numbers<[1], [0], [0], [1], [0, 0, 1, 1], [], []>} : vector<8x64xf32>, vector<64x128xf32>, vector<8x128xf32> -> vector<8x128xf32>
    %c0_3 = arith.constant 0 : index
    %c0_4 = arith.constant 0 : index
    %3 = vector.load %arg3[%c0_3, %c0_4] : memref<1x128xf32, #tpu.memory_space<vmem>>, vector<1x128xf32>
    %4 = vector.broadcast %3 : vector<1x128xf32> to vector<8x128xf32>
    %5 = arith.addf %2, %4 : vector<8x128xf32>
    %c0_5 = arith.constant 0 : index
    %c0_6 = arith.constant 0 : index
    %6 = vector.load %arg4[%c0_5, %c0_6] : memref<8x128xf32, #tpu.memory_space<vmem>>, vector<8x128xf32>
    tpu.vector_store %arg4[%c0_5, %c0_6], %5 {strides = array<i32>} : memref<8x128xf32, #tpu.memory_space<vmem>>, vector<8x128xf32>,
    return
  }
  func.func @transform_0(%arg0: i32) -> (i32, i32) {
    %c0_i32 = arith.constant 0 : i32
    %c0_i32_0 = arith.constant 0 : i32
    return %arg0, %c0_i32 : i32, i32
  }
  func.func @transform_1(%arg0: i32) -> (i32, i32) {
    %c0_i32 = arith.constant 0 : i32
    %c0_i32_0 = arith.constant 0 : i32
    %c0_i32_1 = arith.constant 0 : i32
    return %c0_i32, %c0_i32_0 : i32, i32
  }
  func.func @transform_2(%arg0: i32) -> (i32, i32) {
    %c0_i32 = arith.constant 0 : i32
    %c0_i32_0 = arith.constant 0 : i32
    %c0_i32_1 = arith.constant 0 : i32
    return %c0_i32, %c0_i32_0 : i32, i32
  }
  func.func @transform_3(%arg0: i32) -> (i32, i32) {
    %c0_i32 = arith.constant 0 : i32
    %c0_i32_0 = arith.constant 0 : i32
    return %arg0, %c0_i32 : i32, i32
  }
}

</mosaic_0001>

<llo_original>
// kernel: tpu_custom_call.1
$region0: #{tpu_custom_call.1}
  #allocation0 [shape = 'u32[]', space=smem, size = 0x4, offset = 0x4, fixed_abs, tag = 'smem constant byte address 0x4 - core index']
  #allocation1 [shape = 'u32[144,128]{1,0:T(1,128)}', space=vmem, size = 0x12000, scoped, tag = 'internal scratch']
  %s0 = inlined_call_operand.hbm [shape: f32[8,64], index: 0, kind: input, shape index: {}]
  %s1 = inlined_call_operand.hbm [shape: f32[64,128], index: 1, kind: input, shape index: {}]
  %s2 = inlined_call_operand.vmem [shape: f32[1,128], index: 2, kind: input, shape index: {}]
  %s3 = inlined_call_operand.hbm [shape: f32[8,128], index: 3, kind: output, shape index: {}]
  %s4 = sld [smem:[#allocation0]]
  $region30: #{tpu_custom_call.1} parent=0
    _
  %s6 = ssub.s32 1, %s4
  %s7 = scalar_select 0, %s6, %s4
  $region1: #{tpu_custom_call.1} parent=0
    #allocation2 [shape = 'u8[4096]{0}', space=vmem, size = 0x1000, scoped, tag = 'input window, operand 0, single buffered']
    #allocation3 [shape = 's32[1]{0}', space=sflag, size = 0x4, scoped, tag = 'scoped memory for tpu_custom_call.1']
    #allocation4 [shape = 's32[1]{0}', space=sflag, size = 0x4, scoped, tag = 'scoped memory for tpu_custom_call.1']
    #allocation5 [shape = 'u8[32768]{0}', space=vmem, size = 0x8000, scoped, tag = 'input window, operand 1, single buffered']
    #allocation6 [shape = 's32[1]{0}', space=sflag, size = 0x4, scoped, tag = 'scoped memory for tpu_custom_call.1']
    #allocation7 [shape = 'u8[4096]{0}', space=vmem, size = 0x1000, scoped, tag = 'output window, operand 0, single buffered']
    %8 = vsyncpa [#allocation3], 0
    %9 = vsyncpa [#allocation6], 0
    %10 = vsyncpa [#allocation4], 0
    // Predicated region
    $region2: #{tpu_custom_call.1} parent=1 // pred_check
      _
    $region3: #{tpu_custom_call.1} parent=1 // pred_check_branch
      %12 = sbr.rel (0) target = $region5
    $region4: #{tpu_custom_call.1} parent=1 // pred_region
      %s14 = ssub.s32 128, 128
      %15 = vsyncadd [#allocation3], %s14
      %s17 = sshll.u32 [#allocation2], 4
      %s18 = int_to_ptr.vmem [resolvable:$true] %s17
      %20 = dma.hbm_to_vmem [thread:$0]  %s0, 128, %s18, [#allocation3]
    $region5: #{tpu_custom_call.1} parent=1 // pred_fallthru
      _
    // Predicated region
    $region6: #{tpu_custom_call.1} parent=1 // pred_check
      _
    $region7: #{tpu_custom_call.1} parent=1 // pred_check_branch
      %22 = sbr.rel (0) target = $region9
    $region8: #{tpu_custom_call.1} parent=1 // pred_region
      %s24 = ssub.s32 1024, 1024
      %25 = vsyncadd [#allocation6], %s24
      %s26 = sshll.u32 [#allocation5], 4
      %s27 = int_to_ptr.vmem [resolvable:$true] %s26
      %32 = dma.hbm_to_vmem [thread:$0]  %s1, 1024, %s27, [#allocation6], 128, 128, 8
    $region9: #{tpu_custom_call.1} parent=1 // pred_fallthru
      _
    // Predicated region
    $region10: #{tpu_custom_call.1} parent=1 // pred_check
      _
    $region11: #{tpu_custom_call.1} parent=1 // pred_check_branch
      %34 = sbr.rel (0) target = $region13
    $region12: #{tpu_custom_call.1} parent=1 // pred_region
      _
    $region13: #{tpu_custom_call.1} parent=1 // pred_fallthru
      _
    // Predicated region
    $region14: #{tpu_custom_call.1} parent=1 // pred_check
      _
    $region15: #{tpu_custom_call.1} parent=1 // pred_check_branch
      %36 = sbr.rel (0) target = $region17
    $region16: #{tpu_custom_call.1} parent=1 // pred_region
      %37 = dma.done [#allocation3], 128
    $region17: #{tpu_custom_call.1} parent=1 // pred_fallthru
      _
    // Predicated region
    $region18: #{tpu_custom_call.1} parent=1 // pred_check
      _
    $region19: #{tpu_custom_call.1} parent=1 // pred_check_branch
      %39 = sbr.rel (0) target = $region21
    $region20: #{tpu_custom_call.1} parent=1 // pred_region
      %40 = dma.done [#allocation6], 1024
    $region21: #{tpu_custom_call.1} parent=1 // pred_fallthru
      _
    %v41 = vld [vmem:[#allocation2] sm:$0xff]
    %v42 = vld [vmem:[#allocation5] sm:$0xff]
    %v43 = vld [vmem:[#allocation5 + $0x8] sm:$0xff]
    %v44 = vld [vmem:[#allocation5 + $0x10] sm:$0xff]
    %v45 = vld [vmem:[#allocation5 + $0x18] sm:$0xff]
    %v46 = vld [vmem:[#allocation5 + $0x20] sm:$0xff]
    %v47 = vld [vmem:[#allocation5 + $0x28] sm:$0xff]
    %v48 = vld [vmem:[#allocation5 + $0x30] sm:$0xff]
    %v49 = vld [vmem:[#allocation5 + $0x38] sm:$0xff]
    %v50 = vld [vmem:[%s2] sm:$0x1]
    %v52 = vlaneseq
    %v53 = vshrl.u32 %v52, 7
    %v54 = vsub.s32 0, %v53
    %v55 = vrot.slane %v50, %v54
    %vm57 = vcmask 523264
    %v59 = vsel %vm57, %v41, 0
    %61 = vmatprep.subr.mxu0 0.0
    %62 = vmatpush1.msra.mxu0 %v42
    %63 = vmatprep.subr.mxu0 0.0
    %64 = vmatpush1.msra.mxu0 %v43
    %65 = vmatprep.subr.mxu0 0.0
    %66 = vmatpush1.msra.mxu0 %v44
    %67 = vmatprep.subr.mxu0 0.0
    %68 = vmatpush1.msra.mxu0 %v45
    %69 = vmatprep.subr.mxu0 0.0
    %70 = vmatpush1.msra.mxu0 %v46
    %71 = vmatprep.subr.mxu0 0.0
    %72 = vmatpush1.msra.mxu0 %v47
    %73 = vmatprep.subr.mxu0 0.0
    %74 = vmatpush1.msra.mxu0 %v48
    %75 = vmatprep.subr.mxu0 0.0
    %76 = vmatpush1.msra.mxu0 %v49
    %77 = vmatprep.subr.mxu0 0.0
    %78 = vmatpush1.msra.mxu0 0.0
    %79 = vmatprep.subr.mxu0 0.0
    %80 = vmatpush1.msra.mxu0 0.0
    %81 = vmatprep.subr.mxu0 0.0
    %82 = vmatpush1.msra.mxu0 0.0
    %83 = vmatprep.subr.mxu0 0.0
    %84 = vmatpush1.msra.mxu0 0.0
    %85 = vmatprep.subr.mxu0 0.0
    %86 = vmatpush1.msra.mxu0 0.0
    %87 = vmatprep.subr.mxu0 0.0
    %88 = vmatpush1.msra.mxu0 0.0
    %89 = vmatprep.subr.mxu0 0.0
    %90 = vmatpush1.msra.mxu0 0.0
    %91 = vmatprep.subr.mxu0 0.0
    %92 = vmatpush1.msra.mxu0 0.0
    %93 = vmatprep.subr.mxu0 0.0
    %94 = vmatpush1.msra.mxu0 0.0
    %95 = vmatprep.subr.mxu0 0.0
    %96 = vmatpush1.msra.mxu0 0.0
    %97 = vmatprep.subr.mxu0 0.0
    %98 = vmatpush1.msra.mxu0 0.0
    %99 = vmatprep.subr.mxu0 0.0
    %100 = vmatpush1.msra.mxu0 0.0
    %101 = vmatprep.subr.mxu0 0.0
    %102 = vmatpush1.msra.mxu0 0.0
    %103 = vmatprep.subr.mxu0 0.0
    %104 = vmatpush1.msra.mxu0 0.0
    %105 = vmatprep.subr.mxu0 0.0
    %106 = vmatpush1.msra.mxu0 0.0
    %107 = vmatprep.subr.mxu0 0.0
    %108 = vmatpush1.msra.mxu0 0.0
    %109 = vmatprep.subr.mxu0 0.0
    %110 = vmatpush1.msra.mxu0 0.0
    %111 = vmatprep.subr.mxu0 0.0
    %112 = vmatpush1.msra.mxu0 0.0
    %113 = vmatprep.subr.mxu0 0.0
    %114 = vmatpush1.msra.mxu0 0.0
    %115 = vmatprep.subr.mxu0 0.0
    %116 = vmatpush1.msra.mxu0 0.0
    %117 = vmatprep.subr.mxu0 0.0
    %118 = vmatpush1.msra.mxu0 0.0
    %119 = vmatprep.subr.mxu0 0.0
    %120 = vmatpush1.msra.mxu0 0.0
    %121 = vmatprep.subr.mxu0 0.0
    %122 = vmatpush1.msra.mxu0 0.0
    %123 = vmatprep.subr.mxu0 0.0
    %124 = vmatpush1.msra.mxu0 0.0
    %125 = vmatprep.mubr.f32.mxu0 0.0
    %126 = vmatmul.mubr.f32.gmra.mrb[0].mxu0 %v59
    %v127 = vpop.f32.mrb[0].mxu0
    %v128 = vadd.f32 %v55, %v127
    %v129 = vpop.f32.mrb[0].mxu0
    %130 = vdwg.mxu0
    %131 = vst [vmem:[#allocation7] sm:$0xff] %v128
    // Predicated region
    $region22: #{tpu_custom_call.1} parent=1 // pred_check
      _
    $region23: #{tpu_custom_call.1} parent=1 // pred_check_branch
      %133 = sbr.rel (0) target = $region25
    $region24: #{tpu_custom_call.1} parent=1 // pred_region
      %s135 = ssub.s32 128, 128
      %136 = vsyncadd [#allocation4], %s135
      %s138 = sshll.u32 [#allocation7], 4
      %s139 = int_to_ptr.vmem [resolvable:$true] %s138
      %141 = dma.vmem_to_hbm [thread:$0]  %s139, 128, %s3, [#allocation4]
    $region25: #{tpu_custom_call.1} parent=1 // pred_fallthru
      _
    // Predicated region
    $region26: #{tpu_custom_call.1} parent=1 // pred_check
      _
    $region27: #{tpu_custom_call.1} parent=1 // pred_check_branch
      %143 = sbr.rel (0) target = $region29
    $region28: #{tpu_custom_call.1} parent=1 // pred_region
      %144 = dma.done [#allocation4], 128
    $region29: #{tpu_custom_call.1} parent=1 // pred_fallthru
      _
    %145 = vsyncpa [#allocation3], 1
    %146 = vsyncpa [#allocation6], 1
    %147 = vsyncpa [#allocation4], 1

</llo_original>
